<compile_context>
chip_gen: v7x
topology: tpu7x:2x2x1
jax: 0.10.0
libtpu: 0.0.40
codegen_flags: <defaults>
</compile_context>

<pallas_src>
import functools
import math

import jax
import jax.numpy as jnp
from jax.experimental import pallas as pl
from jax.experimental.pallas import tpu as pltpu


def _vmem_limit(block_nbytes):
    """Explicit VMEM budget: double-buffered blocks + margin, clamped for v7x."""
    need = 2 * sum(block_nbytes) + (8 << 20)
    return int(min(max(need, 32 << 20), 60 << 20))


# ----------------------------------------------------------------------------
# Kernel 1: per (batch, head, q-tile) differential attention
# ----------------------------------------------------------------------------
def _attn_head_kernel(lam_ref, x_ref, wq_ref, wkv_ref, cosq_ref, sinq_ref,
                      cosk_ref, sink_ref, out_ref, *, n_terms, head_size, tq):
    h = pl.program_id(1)
    qt = pl.program_id(2)
    hs = head_size
    half = hs // 2
    nk = n_terms * hs

    x = x_ref[0]                                   # (T, C) bf16, resident per b
    T = x.shape[0]

    # Fused K|V projection over all T rows (bf16 x bf16 -> f32 accumulate).
    kv = jnp.dot(x, wkv_ref[0], preferred_element_type=jnp.float32)   # (T, nk+2hs)
    k_all = kv[:, :nk]
    v = kv[:, nk:].astype(jnp.bfloat16)                               # (T, 2*hs)

    # Fused Q projection for this query tile only.
    if tq == T:
        xq = x
    else:
        xq = x_ref[0, pl.ds(pl.multiple_of(qt * tq, tq), tq), :]
    qa = jnp.dot(xq, wq_ref[0], preferred_element_type=jnp.float32)   # (tq, nk)

    # RoPE (rotate-half).  Weights were column-de-interleaved in glue so each
    # hs block is [real half | imag half]; the sign lives in the sin tables and
    # the 1/sqrt(hs) score scale is pre-folded into the query-side tables.
    def rot_src(a):
        pieces = []
        for i in range(n_terms):
            blk = a[:, i * hs:(i + 1) * hs]
            pieces.append(blk[:, half:])
            pieces.append(blk[:, :half])
        return jnp.concatenate(pieces, axis=-1)

    q_rot = qa * cosq_ref[...] + rot_src(qa) * sinq_ref[...]          # (tq, nk)
    k_rot = k_all * cosk_ref[...] + rot_src(k_all) * sink_ref[...]    # (T, nk)

    # Causal mask for this query tile.
    row = qt * tq + jax.lax.broadcasted_iota(jnp.int32, (tq, T), 0)
    col = jax.lax.broadcasted_iota(jnp.int32, (tq, T), 1)
    causal = col <= row
    # TODO(synk): for long sequences, also skip fully-masked kv ranges instead
    # of relying on the mask alone.

    acc = jnp.zeros((tq, 2 * hs), jnp.float32)
    for i in range(n_terms):                        # static, small loop
        qi = q_rot[:, i * hs:(i + 1) * hs].astype(jnp.bfloat16)
        ki = k_rot[:, i * hs:(i + 1) * hs].astype(jnp.bfloat16)
        s = jnp.dot(qi, ki.T, preferred_element_type=jnp.float32)     # (tq, T), scaled
        s = jnp.where(causal, s, -jnp.inf)
        m = jnp.max(s, axis=-1, keepdims=True)
        p = jnp.exp(s - m)                                            # f32
        denom = jnp.sum(p, axis=-1, keepdims=True)
        # sign folded into lam in glue; normalize + scale in one pass (EUP recip).
        coef = lam_ref[h, i] * pl.reciprocal(denom, approx=True)
        p = (p * coef).astype(jnp.bfloat16)
        acc = acc + jnp.dot(p, v, preferred_element_type=jnp.float32)

    out_ref[0] = acc                                                  # concat layout slot


# ----------------------------------------------------------------------------
# Kernel 2: group layer-norm + (1 - lambda_init) scaling + output projection
# ----------------------------------------------------------------------------
def _norm_proj_kernel(y_ref, gamma_ref, beta_ref, wp_ref, bp_ref, out_ref, *,
                      scale_out):
    y = y_ref[0]                                   # (tt, D) f32
    mean = jnp.mean(y, axis=-1, keepdims=True)
    var = jnp.mean((y - mean) ** 2, axis=-1, keepdims=True)   # unbiased=False
    yn = (y - mean) * jax.lax.rsqrt(var + 1e-5)
    yn = (yn * gamma_ref[...] + beta_ref[...]) * scale_out
    out_ref[0] = (jnp.dot(yn.astype(jnp.bfloat16), wp_ref[...],
                          preferred_element_type=jnp.float32) + bp_ref[...])
    # TODO(synk): for very large D, stream wp over a D-reduction grid axis with
    # a VMEM f32 accumulator instead of holding the whole (D, C) block.


# ----------------------------------------------------------------------------
# Wrapper (tiny parameter arithmetic / layout prep in plain JAX)
# ----------------------------------------------------------------------------
def multi_head_alt_diff_attention(x, params, layer_idx, *, num_heads, head_size,
                                  n_terms, block_size):
    B, T, C = x.shape
    hs = head_size
    half = hs // 2
    nk = n_terms * hs
    D = num_heads * 2 * hs

    tq = T if T <= 256 else 256          # query tile for kernel 1
    tt = T if T <= 512 else 512          # T tile for kernel 2
    assert T % tq == 0 and T % tt == 0, "sequence length must divide the tile"

    # ---- lambda per head/term, alternating sign folded in (glue) ----
    dyn_init = 0.8 - 0.6 * jnp.exp(-0.3 * (jnp.float32(layer_idx) - 1.0))
    e = jnp.exp(params["lambda_q"] * params["lambda_k"])          # (H, n_terms, hs)
    diff = jnp.concatenate([e[:, :1], e[:, 1:] - e[:, :-1]], axis=1)
    lam = jnp.mean(diff + dyn_init, axis=-1)                      # (H, n_terms)
    signs = jnp.array([(-1.0) ** i for i in range(n_terms)], jnp.float32)
    lam_signed = (lam * signs).astype(jnp.float32)

    # ---- RoPE tables (rotate-half form, fused across terms) ----
    scale = 1.0 / math.sqrt(hs)
    freqs = 1.0 / (10000.0 ** (jnp.arange(0, hs, 2)[:half].astype(jnp.float32) / hs))
    ang = jnp.outer(jnp.arange(block_size, dtype=jnp.float32), freqs)[:T]   # (T, hs//2)
    c, s = jnp.cos(ang), jnp.sin(ang)
    cos_f = jnp.tile(jnp.concatenate([c, c], axis=-1), (1, n_terms))        # (T, nk)
    sin_f = jnp.tile(jnp.concatenate([-s, s], axis=-1), (1, n_terms))       # sign folded
    cos_q, sin_q = cos_f * scale, sin_f * scale      # fold 1/sqrt(hs) into the q side
    cos_k, sin_k = cos_f, sin_f

    # ---- fused, de-interleaved weights (shared column perm keeps q@k^T) ----
    perm = jnp.concatenate([jnp.arange(0, hs, 2), jnp.arange(1, hs, 2)])
    wq_fused = jnp.transpose(params["wq"][..., perm], (0, 2, 1, 3)).reshape(
        num_heads, C, nk).astype(jnp.bfloat16)
    wk_fused = jnp.transpose(params["wk"][..., perm], (0, 2, 1, 3)).reshape(
        num_heads, C, nk)
    wkv_fused = jnp.concatenate([wk_fused, params["wv"]],
                                axis=-1).astype(jnp.bfloat16)   # (H, C, nk+2hs)

    x_bf16 = x.astype(jnp.bfloat16)
    num_qt = T // tq

    k1_blocks = [T * C * 2, C * nk * 2, C * (nk + 2 * hs) * 2,
                 2 * tq * nk * 4, 2 * T * nk * 4, tq * 2 * hs * 4]
    heads_out = pl.pallas_call(
        functools.partial(_attn_head_kernel, n_terms=n_terms, head_size=hs, tq=tq),
        out_shape=jax.ShapeDtypeStruct((B, T, D), jnp.float32),
        grid=(B, num_heads, num_qt),
        in_specs=[
            pl.BlockSpec(memory_space=pltpu.MemorySpace.SMEM),               # lam
            pl.BlockSpec((1, T, C), lambda b, h, q: (b, 0, 0)),              # x (resident per b)
            pl.BlockSpec((1, C, nk), lambda b, h, q: (h, 0, 0)),             # wq fused
            pl.BlockSpec((1, C, nk + 2 * hs), lambda b, h, q: (h, 0, 0)),    # wk|wv fused
            pl.BlockSpec((tq, nk), lambda b, h, q: (q, 0)),                  # cos_q (scaled)
            pl.BlockSpec((tq, nk), lambda b, h, q: (q, 0)),                  # sin_q (scaled)
            pl.BlockSpec((T, nk), lambda b, h, q: (0, 0)),                   # cos_k
            pl.BlockSpec((T, nk), lambda b, h, q: (0, 0)),                   # sin_k
        ],
        # write directly into the torch.cat concat layout (head h -> slot h)
        out_specs=pl.BlockSpec((1, tq, 2 * hs), lambda b, h, q: (b, q, h)),
        compiler_params=pltpu.CompilerParams(
            dimension_semantics=("parallel", "parallel", "parallel"),
            vmem_limit_bytes=_vmem_limit(k1_blocks)),
    )(lam_signed, x_bf16, wq_fused, wkv_fused, cos_q, sin_q, cos_k, sin_k)

    # note: the multi-head module's own lambda_init buffer stays 0.8, so the
    # output scale is the constant (1 - 0.8) = 0.2.
    wp_bf16 = params["wp"].astype(jnp.bfloat16)
    k2_blocks = [tt * D * 4, 2 * D * 4, D * C * 2, C * 4, tt * C * 4]
    out = pl.pallas_call(
        functools.partial(_norm_proj_kernel, scale_out=0.2),
        out_shape=jax.ShapeDtypeStruct((B, T, C), jnp.float32),
        grid=(B, T // tt),
        in_specs=[
            pl.BlockSpec((1, tt, D), lambda b, t: (b, t, 0)),
            pl.BlockSpec((1, D), lambda b, t: (0, 0)),
            pl.BlockSpec((1, D), lambda b, t: (0, 0)),
            pl.BlockSpec((D, C), lambda b, t: (0, 0)),
            pl.BlockSpec((1, C), lambda b, t: (0, 0)),
        ],
        out_specs=pl.BlockSpec((1, tt, C), lambda b, t: (b, t, 0)),
        compiler_params=pltpu.CompilerParams(
            dimension_semantics=("parallel", "parallel"),
            vmem_limit_bytes=_vmem_limit(k2_blocks)),
    )(heads_out, params["gn_weight"], params["gn_bias"], wp_bf16, params["bp"])

    return out


# ----------------------------------------------------------------------------
# Pure-JAX f32 reference (mirrors the PyTorch forward, interleaved RoPE)
# ----------------------------------------------------------------------------
def reference_forward(x, params, layer_idx, *, num_heads, head_size, n_terms,
                      block_size):
    B, T, C = x.shape
    hs = head_size
    freqs = 1.0 / (10000.0 ** (jnp.arange(0, hs, 2)[: hs // 2].astype(jnp.float32) / hs))
    ang = jnp.outer(jnp.arange(block_size, dtype=jnp.float32), freqs)[:T]
    cos, sin = jnp.cos(ang), jnp.sin(ang)                      # (T, hs//2)

    def rope(z):                                               # interleaved pairs
        ze, zo = z[..., 0::2], z[..., 1::2]
        re = ze * cos - zo * sin
        im = ze * sin + zo * cos
        return jnp.stack([re, im], axis=-1).reshape(z.shape)

    dyn_init = 0.8 - 0.6 * jnp.exp(-0.3 * (jnp.float32(layer_idx) - 1.0))
    mask = jnp.tril(jnp.ones((T, T), bool))
    outs = []
    for h in range(num_heads):
        e = jnp.exp(params["lambda_q"][h] * params["lambda_k"][h])   # (n_terms, hs)
        lams = []
        for i in range(n_terms):
            li = e[i] - (e[i - 1] if i > 0 else 0.0) + dyn_init
            lams.append(jnp.mean(li))
        v = x @ params["wv"][h]
        diff = 0.0
        for i in range(n_terms):
            q = rope(x @ params["wq"][h, i])
            k = rope(x @ params["wk"][h, i])
            att = q @ jnp.swapaxes(k, -1, -2) / math.sqrt(hs)
            att = jnp.where(mask, att, -jnp.inf)
            att = jax.nn.softmax(att, axis=-1)
            sign = -1.0 if (i % 2) else 1.0
            diff = diff + sign * lams[i] * att
        outs.append(diff @ v)
    y = jnp.concatenate(outs, axis=-1)
    mean = y.mean(-1, keepdims=True)
    var = ((y - mean) ** 2).mean(-1, keepdims=True)
    yn = (y - mean) / jnp.sqrt(var + 1e-5)
    yn = yn * params["gn_weight"] + params["gn_bias"]
    yn = yn * 0.2
    return yn @ params["wp"] + params["bp"]


# ----------------------------------------------------------------------------
if __name__ == "__main__":
    B, T = 2, 8
    n_embd = 64
    head_size = 64          # 2*hs = 128 -> lane-dense concat-layout stores
    num_heads = 2
    n_terms = 2
    block_size = 8
    layer_idx = 3.0
    D = num_heads * 2 * head_size

    key = jax.random.PRNGKey(0)
    ks = jax.random.split(key, 10)
    params = {
        "wq": 0.02 * jax.random.normal(ks[0], (num_heads, n_terms, n_embd, head_size), jnp.float32),
        "wk": 0.02 * jax.random.normal(ks[1], (num_heads, n_terms, n_embd, head_size), jnp.float32),
        "wv": 0.02 * jax.random.normal(ks[2], (num_heads, n_embd, 2 * head_size), jnp.float32),
        "lambda_q": 0.1 * jax.random.normal(ks[3], (num_heads, n_terms, head_size), jnp.float32),
        "lambda_k": 0.1 * jax.random.normal(ks[4], (num_heads, n_terms, head_size), jnp.float32),
        "gn_weight": 1.0 + 0.1 * jax.random.normal(ks[5], (1, D), jnp.float32),
        "gn_bias": 0.1 * jax.random.normal(ks[6], (1, D), jnp.float32),
        "wp": 0.02 * jax.random.normal(ks[7], (D, n_embd), jnp.float32),
        "bp": 0.01 * jax.random.normal(ks[8], (1, n_embd), jnp.float32),
    }
    x = jax.random.normal(ks[9], (B, T, n_embd), jnp.float32)

    out = multi_head_alt_diff_attention(
        x, params, layer_idx, num_heads=num_heads, head_size=head_size,
        n_terms=n_terms, block_size=block_size)
    out = jax.block_until_ready(out)

    ref = reference_forward(
        x, params, layer_idx, num_heads=num_heads, head_size=head_size,
        n_terms=n_terms, block_size=block_size)
    assert out.shape == (B, T, n_embd)
    # bf16 matmul operands + approx reciprocal -> looser tolerance than pure f32
    max_err = jnp.max(jnp.abs(out - ref))
    assert jnp.allclose(out, ref, atol=5e-3, rtol=5e-2), f"max abs err {max_err}"

    print("KERNEL_OK")
</pallas_src>

<mosaic_0001>
module attributes {stable_mosaic.version = 11 : i64} {
  func.func @_attn_head_kernel(%arg0: i32, %arg1: i32, %arg2: i32, %arg3: memref<2x2xf32, #tpu.memory_space<smem>>, %arg4: memref<1x8x64xbf16, #tpu.memory_space<vmem>>, %arg5: memref<1x64x128xbf16, #tpu.memory_space<vmem>>, %arg6: memref<1x64x256xbf16, #tpu.memory_space<vmem>>, %arg7: memref<8x128xf32, #tpu.memory_space<vmem>>, %arg8: memref<8x128xf32, #tpu.memory_space<vmem>>, %arg9: memref<8x128xf32, #tpu.memory_space<vmem>>, %arg10: memref<8x128xf32, #tpu.memory_space<vmem>>, %arg11: memref<1x8x128xf32, #tpu.memory_space<vmem>>) attributes {dimension_semantics = [#tpu.dimension_semantics<parallel>, #tpu.dimension_semantics<parallel>, #tpu.dimension_semantics<parallel>], iteration_bounds = array<i64: 2, 2, 1>, scalar_prefetch = 0 : i64, scratch_operands = 0 : i64, tpu.core_type = #tpu.core_type<tc>, window_params = [{transform_indices = @transform_0, window_bounds = array<i64: 2, 2>}, {transform_indices = @transform_1, window_bounds = array<i64: 1, 8, 64>}, {transform_indices = @transform_2, window_bounds = array<i64: 1, 64, 128>}, {transform_indices = @transform_3, window_bounds = array<i64: 1, 64, 256>}, {transform_indices = @transform_4, window_bounds = array<i64: 8, 128>}, {transform_indices = @transform_5, window_bounds = array<i64: 8, 128>}, {pipeline_mode = #tpu.pipeline_mode<synchronous>, transform_indices = @transform_6, window_bounds = array<i64: 8, 128>}, {pipeline_mode = #tpu.pipeline_mode<synchronous>, transform_indices = @transform_7, window_bounds = array<i64: 8, 128>}, {transform_indices = @transform_8, window_bounds = array<i64: 1, 8, 128>}]} {
    %c0 = arith.constant 0 : index
    %c0_0 = arith.constant 0 : index
    %c0_1 = arith.constant 0 : index
    %0 = vector.load %arg4[%c0, %c0_0, %c0_1] : memref<1x8x64xbf16, #tpu.memory_space<vmem>>, vector<1x8x64xbf16>
    %1 = vector.shape_cast %0 : vector<1x8x64xbf16> to vector<8x64xbf16>
    %c0_2 = arith.constant 0 : index
    %c0_3 = arith.constant 0 : index
    %c0_4 = arith.constant 0 : index
    %2 = vector.load %arg6[%c0_2, %c0_3, %c0_4] : memref<1x64x256xbf16, #tpu.memory_space<vmem>>, vector<1x64x256xbf16>
    %3 = vector.shape_cast %2 : vector<1x64x256xbf16> to vector<64x256xbf16>
    %cst = arith.constant dense<0.000000e+00> : vector<8x256xf32>
    %4 = tpu.matmul %1, %3, %cst {dimension_numbers = #tpu.dot_dimension_numbers<[1], [0], [0], [1], [0, 0, 1, 1], [], []>} : vector<8x64xbf16>, vector<64x256xbf16>, vector<8x256xf32> -> vector<8x256xf32>
    %5 = vector.extract_strided_slice %4 {offsets = [0, 0], sizes = [8, 128], strides = [1, 1]} : vector<8x256xf32> to vector<8x128xf32>
    %6 = vector.extract_strided_slice %4 {offsets = [0, 128], sizes = [8, 128], strides = [1, 1]} : vector<8x256xf32> to vector<8x128xf32>
    %7 = arith.truncf %6 : vector<8x128xf32> to vector<8x128xbf16>
    %c0_5 = arith.constant 0 : index
    %c0_6 = arith.constant 0 : index
    %c0_7 = arith.constant 0 : index
    %8 = vector.load %arg5[%c0_5, %c0_6, %c0_7] : memref<1x64x128xbf16, #tpu.memory_space<vmem>>, vector<1x64x128xbf16>
    %9 = vector.shape_cast %8 : vector<1x64x128xbf16> to vector<64x128xbf16>
    %cst_8 = arith.constant dense<0.000000e+00> : vector<8x128xf32>
    %10 = tpu.matmul %1, %9, %cst_8 {dimension_numbers = #tpu.dot_dimension_numbers<[1], [0], [0], [1], [0, 0, 1, 1], [], []>} : vector<8x64xbf16>, vector<64x128xbf16>, vector<8x128xf32> -> vector<8x128xf32>
    %c0_9 = arith.constant 0 : index
    %c0_10 = arith.constant 0 : index
    %11 = vector.load %arg7[%c0_9, %c0_10] : memref<8x128xf32, #tpu.memory_space<vmem>>, vector<8x128xf32>
    %12 = arith.mulf %10, %11 : vector<8x128xf32>
    %13 = vector.extract_strided_slice %10 {offsets = [0, 0], sizes = [8, 64], strides = [1, 1]} : vector<8x128xf32> to vector<8x64xf32>
    %14 = vector.extract_strided_slice %13 {offsets = [0, 32], sizes = [8, 32], strides = [1, 1]} : vector<8x64xf32> to vector<8x32xf32>
    %15 = vector.extract_strided_slice %13 {offsets = [0, 0], sizes = [8, 32], strides = [1, 1]} : vector<8x64xf32> to vector<8x32xf32>
    %16 = vector.extract_strided_slice %10 {offsets = [0, 64], sizes = [8, 64], strides = [1, 1]} : vector<8x128xf32> to vector<8x64xf32>
    %17 = vector.extract_strided_slice %16 {offsets = [0, 32], sizes = [8, 32], strides = [1, 1]} : vector<8x64xf32> to vector<8x32xf32>
    %18 = vector.extract_strided_slice %16 {offsets = [0, 0], sizes = [8, 32], strides = [1, 1]} : vector<8x64xf32> to vector<8x32xf32>
    %19 = tpu.concatenate %14, %15, %17, %18 in 1 : vector<8x32xf32>, vector<8x32xf32>, vector<8x32xf32>, vector<8x32xf32> -> vector<8x128xf32>
    %c0_11 = arith.constant 0 : index
    %c0_12 = arith.constant 0 : index
    %20 = vector.load %arg8[%c0_11, %c0_12] : memref<8x128xf32, #tpu.memory_space<vmem>>, vector<8x128xf32>
    %21 = arith.mulf %19, %20 : vector<8x128xf32>
    %22 = arith.addf %12, %21 : vector<8x128xf32>
    %c0_13 = arith.constant 0 : index
    %c0_14 = arith.constant 0 : index
    %23 = vector.load %arg9[%c0_13, %c0_14] : memref<8x128xf32, #tpu.memory_space<vmem>>, vector<8x128xf32>
    %24 = arith.mulf %5, %23 : vector<8x128xf32>
    %25 = vector.extract_strided_slice %5 {offsets = [0, 0], sizes = [8, 64], strides = [1, 1]} : vector<8x128xf32> to vector<8x64xf32>
    %26 = vector.extract_strided_slice %25 {offsets = [0, 32], sizes = [8, 32], strides = [1, 1]} : vector<8x64xf32> to vector<8x32xf32>
    %27 = vector.extract_strided_slice %25 {offsets = [0, 0], sizes = [8, 32], strides = [1, 1]} : vector<8x64xf32> to vector<8x32xf32>
    %28 = vector.extract_strided_slice %5 {offsets = [0, 64], sizes = [8, 64], strides = [1, 1]} : vector<8x128xf32> to vector<8x64xf32>
    %29 = vector.extract_strided_slice %28 {offsets = [0, 32], sizes = [8, 32], strides = [1, 1]} : vector<8x64xf32> to vector<8x32xf32>
    %30 = vector.extract_strided_slice %28 {offsets = [0, 0], sizes = [8, 32], strides = [1, 1]} : vector<8x64xf32> to vector<8x32xf32>
    %31 = tpu.concatenate %26, %27, %29, %30 in 1 : vector<8x32xf32>, vector<8x32xf32>, vector<8x32xf32>, vector<8x32xf32> -> vector<8x128xf32>
    %c0_15 = arith.constant 0 : index
    %c0_16 = arith.constant 0 : index
    %32 = vector.load %arg10[%c0_15, %c0_16] : memref<8x128xf32, #tpu.memory_space<vmem>>, vector<8x128xf32>
    %33 = arith.mulf %31, %32 : vector<8x128xf32>
    %34 = arith.addf %24, %33 : vector<8x128xf32>
    %c8_i32 = arith.constant 8 : i32
    %35 = arith.muli %arg2, %c8_i32 : i32
    %36 = tpu.iota {dimensions = array<i32: 0>} : vector<8x8xi32>
    %37 = vector.broadcast %35 : i32 to vector<8x8xi32>
    %38 = arith.addi %37, %36 : vector<8x8xi32>
    %39 = tpu.iota {dimensions = array<i32: 1>} : vector<8x8xi32>
    %40 = arith.cmpi sle, %39, %38 : vector<8x8xi32>
    %cst_17 = arith.constant 0.000000e+00 : f32
    %41 = vector.broadcast %cst_17 : f32 to vector<8x128xf32>
    %42 = vector.extract_strided_slice %22 {offsets = [0, 0], sizes = [8, 64], strides = [1, 1]} : vector<8x128xf32> to vector<8x64xf32>
    %43 = arith.truncf %42 : vector<8x64xf32> to vector<8x64xbf16>
    %44 = vector.extract_strided_slice %34 {offsets = [0, 0], sizes = [8, 64], strides = [1, 1]} : vector<8x128xf32> to vector<8x64xf32>
    %45 = arith.truncf %44 : vector<8x64xf32> to vector<8x64xbf16>
    %46 = tpu.transpose %45, [1, 0] : vector<8x64xbf16> -> vector<64x8xbf16>
    %cst_18 = arith.constant dense<0.000000e+00> : vector<8x8xf32>
    %47 = tpu.matmul %43, %46, %cst_18 {dimension_numbers = #tpu.dot_dimension_numbers<[1], [0], [0], [1], [0, 0, 1, 1], [], []>} : vector<8x64xbf16>, vector<64x8xbf16>, vector<8x8xf32> -> vector<8x8xf32>
    %cst_19 = arith.constant 0xFF800000 : f32
    %48 = vector.broadcast %cst_19 : f32 to vector<8x8xf32>
    %49 = arith.select %40, %47, %48 : vector<8x8xi1>, vector<8x8xf32>
    %cst_20 = arith.constant dense<0xFF800000> : vector<8xf32>
    %50 = vector.multi_reduction <maximumf>, %49, %cst_20 [1] : vector<8x8xf32> to vector<8xf32>
    %51 = vector.shape_cast %50 : vector<8xf32> to vector<8x1xf32>
    %52 = vector.broadcast %51 : vector<8x1xf32> to vector<8x8xf32>
    %53 = arith.subf %49, %52 : vector<8x8xf32>
    %54 = math.exp %53 : vector<8x8xf32>
    %cst_21 = arith.constant dense<0.000000e+00> : vector<8xf32>
    %55 = vector.multi_reduction <add>, %54, %cst_21 [1] : vector<8x8xf32> to vector<8xf32>
    %56 = vector.shape_cast %55 : vector<8xf32> to vector<8x1xf32>
    %57 = arith.index_cast %arg1 : i32 to index
    %c0_22 = arith.constant 0 : index
    %58 = memref.load %arg3[%57, %c0_22] : memref<2x2xf32, #tpu.memory_space<smem>>
    %59 = tpu.reciprocal %56 {approx = true} : vector<8x1xf32> -> vector<8x1xf32>
    %60 = vector.broadcast %58 : f32 to vector<8x1xf32>
    %61 = arith.mulf %60, %59 : vector<8x1xf32>
    %62 = vector.broadcast %61 : vector<8x1xf32> to vector<8x8xf32>
    %63 = arith.mulf %54, %62 : vector<8x8xf32>
    %64 = arith.truncf %63 : vector<8x8xf32> to vector<8x8xbf16>
    %cst_23 = arith.constant dense<0.000000e+00> : vector<8x128xf32>
    %65 = tpu.matmul %64, %7, %cst_23 {dimension_numbers = #tpu.dot_dimension_numbers<[1], [0], [0], [1], [0, 0, 1, 1], [], []>} : vector<8x8xbf16>, vector<8x128xbf16>, vector<8x128xf32> -> vector<8x128xf32>
    %66 = arith.addf %41, %65 : vector<8x128xf32>
    %67 = vector.extract_strided_slice %22 {offsets = [0, 64], sizes = [8, 64], strides = [1, 1]} : vector<8x128xf32> to vector<8x64xf32>
    %68 = arith.truncf %67 : vector<8x64xf32> to vector<8x64xbf16>
    %69 = vector.extract_strided_slice %34 {offsets = [0, 64], sizes = [8, 64], strides = [1, 1]} : vector<8x128xf32> to vector<8x64xf32>
    %70 = arith.truncf %69 : vector<8x64xf32> to vector<8x64xbf16>
    %71 = tpu.transpose %70, [1, 0] : vector<8x64xbf16> -> vector<64x8xbf16>
    %cst_24 = arith.constant dense<0.000000e+00> : vector<8x8xf32>
    %72 = tpu.matmul %68, %71, %cst_24 {dimension_numbers = #tpu.dot_dimension_numbers<[1], [0], [0], [1], [0, 0, 1, 1], [], []>} : vector<8x64xbf16>, vector<64x8xbf16>, vector<8x8xf32> -> vector<8x8xf32>
    %cst_25 = arith.constant 0xFF800000 : f32
    %73 = vector.broadcast %cst_25 : f32 to vector<8x8xf32>
    %74 = arith.select %40, %72, %73 : vector<8x8xi1>, vector<8x8xf32>
    %cst_26 = arith.constant dense<0xFF800000> : vector<8xf32>
    %75 = vector.multi_reduction <maximumf>, %74, %cst_26 [1] : vector<8x8xf32> to vector<8xf32>
    %76 = vector.shape_cast %75 : vector<8xf32> to vector<8x1xf32>
    %77 = vector.broadcast %76 : vector<8x1xf32> to vector<8x8xf32>
    %78 = arith.subf %74, %77 : vector<8x8xf32>
    %79 = math.exp %78 : vector<8x8xf32>
    %cst_27 = arith.constant dense<0.000000e+00> : vector<8xf32>
    %80 = vector.multi_reduction <add>, %79, %cst_27 [1] : vector<8x8xf32> to vector<8xf32>
    %81 = vector.shape_cast %80 : vector<8xf32> to vector<8x1xf32>
    %82 = arith.index_cast %arg1 : i32 to index
    %c1 = arith.constant 1 : index
    %83 = memref.load %arg3[%82, %c1] : memref<2x2xf32, #tpu.memory_space<smem>>
    %84 = tpu.reciprocal %81 {approx = true} : vector<8x1xf32> -> vector<8x1xf32>
    %85 = vector.broadcast %83 : f32 to vector<8x1xf32>
    %86 = arith.mulf %85, %84 : vector<8x1xf32>
    %87 = vector.broadcast %86 : vector<8x1xf32> to vector<8x8xf32>
    %88 = arith.mulf %79, %87 : vector<8x8xf32>
    %89 = arith.truncf %88 : vector<8x8xf32> to vector<8x8xbf16>
    %cst_28 = arith.constant dense<0.000000e+00> : vector<8x128xf32>
    %90 = tpu.matmul %89, %7, %cst_28 {dimension_numbers = #tpu.dot_dimension_numbers<[1], [0], [0], [1], [0, 0, 1, 1], [], []>} : vector<8x8xbf16>, vector<8x128xbf16>, vector<8x128xf32> -> vector<8x128xf32>
    %91 = arith.addf %66, %90 : vector<8x128xf32>
    %c0_29 = arith.constant 0 : index
    %c0_30 = arith.constant 0 : index
    %c0_31 = arith.constant 0 : index
    %92 = vector.load %arg11[%c0_29, %c0_30, %c0_31] : memref<1x8x128xf32, #tpu.memory_space<vmem>>, vector<1x8x128xf32>
    %93 = vector.shape_cast %92 : vector<1x8x128xf32> to vector<8x128xf32>
    %94 = vector.shape_cast %91 : vector<8x128xf32> to vector<1x8x128xf32>
    tpu.vector_store %arg11[%c0_29, %c0_30, %c0_31], %94 {strides = array<i32>} : memref<1x8x128xf32, #tpu.memory_space<vmem>>, vector<1x8x128xf32>,
    return
  }
  func.func @transform_0(%arg0: i32, %arg1: i32, %arg2: i32) -> (i32, i32) {
    %c0_i32 = arith.constant 0 : i32
    %c0_i32_0 = arith.constant 0 : i32
    %c0_i32_1 = arith.constant 0 : i32
    return %c0_i32, %c0_i32_0 : i32, i32
  }
  func.func @transform_1(%arg0: i32, %arg1: i32, %arg2: i32) -> (i32, i32, i32) {
    %c0_i32 = arith.constant 0 : i32
    %c0_i32_0 = arith.constant 0 : i32
    %c0_i32_1 = arith.constant 0 : i32
    return %arg0, %c0_i32, %c0_i32_0 : i32, i32, i32
  }
  func.func @transform_2(%arg0: i32, %arg1: i32, %arg2: i32) -> (i32, i32, i32) {
    %c0_i32 = arith.constant 0 : i32
    %c0_i32_0 = arith.constant 0 : i32
    %c0_i32_1 = arith.constant 0 : i32
    return %arg1, %c0_i32, %c0_i32_0 : i32, i32, i32
  }
  func.func @transform_3(%arg0: i32, %arg1: i32, %arg2: i32) -> (i32, i32, i32) {
    %c0_i32 = arith.constant 0 : i32
    %c0_i32_0 = arith.constant 0 : i32
    %c0_i32_1 = arith.constant 0 : i32
    return %arg1, %c0_i32, %c0_i32_0 : i32, i32, i32
  }
  func.func @transform_4(%arg0: i32, %arg1: i32, %arg2: i32) -> (i32, i32) {
    %c0_i32 = arith.constant 0 : i32
    %c0_i32_0 = arith.constant 0 : i32
    return %arg2, %c0_i32 : i32, i32
  }
  func.func @transform_5(%arg0: i32, %arg1: i32, %arg2: i32) -> (i32, i32) {
    %c0_i32 = arith.constant 0 : i32
    %c0_i32_0 = arith.constant 0 : i32
    return %arg2, %c0_i32 : i32, i32
  }
  func.func @transform_6(%arg0: i32, %arg1: i32, %arg2: i32) -> (i32, i32) {
    %c0_i32 = arith.constant 0 : i32
    %c0_i32_0 = arith.constant 0 : i32
    %c0_i32_1 = arith.constant 0 : i32
    return %c0_i32, %c0_i32_0 : i32, i32
  }
  func.func @transform_7(%arg0: i32, %arg1: i32, %arg2: i32) -> (i32, i32) {
    %c0_i32 = arith.constant 0 : i32
    %c0_i32_0 = arith.constant 0 : i32
    %c0_i32_1 = arith.constant 0 : i32
    return %c0_i32, %c0_i32_0 : i32, i32
  }
  func.func @transform_8(%arg0: i32, %arg1: i32, %arg2: i32) -> (i32, i32, i32) {
    %c0_i32 = arith.constant 0 : i32
    return %arg0, %arg2, %arg1 : i32, i32, i32
  }
}

</mosaic_0001>

<llo_original>
// kernel: tpu_custom_call.1
$region0: #{tpu_custom_call.1}
  #allocation0 [shape = 'u32[]', space=smem, size = 0x4, offset = 0x4, fixed_abs, tag = 'smem constant byte address 0x4 - core index']
  #allocation1 [shape = 'u32[144,128]{1,0:T(1,128)}', space=vmem, size = 0x12000, scoped, tag = 'internal scratch']
  %s0 = inlined_call_operand.hbm [shape: f32[2,2], index: 0, kind: input, shape index: {}]
  %s1 = inlined_call_operand.hbm [shape: bf16[2,8,64], index: 1, kind: input, shape index: {}]
  %s2 = inlined_call_operand.hbm [shape: bf16[2,64,128], index: 2, kind: input, shape index: {}]
  %s3 = inlined_call_operand.hbm [shape: bf16[2,64,256], index: 3, kind: input, shape index: {}]
  %s4 = inlined_call_operand.vmem [shape: f32[8,128], index: 4, kind: input, shape index: {}]
  %s5 = inlined_call_operand.vmem [shape: f32[8,128], index: 5, kind: input, shape index: {}]
  %s6 = inlined_call_operand.hbm [shape: f32[8,128], index: 6, kind: input, shape index: {}]
  %s7 = inlined_call_operand.vmem [shape: f32[8,128], index: 7, kind: input, shape index: {}]
  %s8 = inlined_call_operand.hbm [shape: f32[2,8,256], index: 8, kind: output, shape index: {}]
  %s9 = sld [smem:[#allocation0]]
  $region85: #{tpu_custom_call.1} parent=0
    _
  %s11 = ssub.s32 1, %s9
  %s12 = scalar_select 0, %s11, %s9
  $region1: #{tpu_custom_call.1} parent=0
    #allocation2 [shape = 'u8[1024]{0}', space=smem, size = 0x400, scoped, tag = 'input window, operand 0, single buffered']
    #allocation3 [shape = 's32[2]{0}', space=sflag, size = 0x8, scoped, tag = 'scoped memory for tpu_custom_call.1']
    #allocation4 [shape = 's32[2]{0}', space=sflag, size = 0x8, scoped, tag = 'scoped memory for tpu_custom_call.1']
    #allocation5 [shape = 's32[2]{0}', space=sflag, size = 0x8, scoped, tag = 'scoped memory for tpu_custom_call.1']
    #allocation6 [shape = 'u8[4096]{0}', space=vmem, size = 0x1000, scoped, tag = 'input window, operand 1']
    #allocation7 [shape = 'u8[32768]{0}', space=vmem, size = 0x8000, scoped, tag = 'input window, operand 2']
    #allocation8 [shape = 's32[2]{0}', space=sflag, size = 0x8, scoped, tag = 'scoped memory for tpu_custom_call.1']
    #allocation9 [shape = 'u8[65536]{0}', space=vmem, size = 0x10000, scoped, tag = 'input window, operand 3']
    #allocation10 [shape = 'u8[4096]{0}', space=vmem, size = 0x1000, scoped, tag = 'input window, operand 6, single buffered']
    #allocation11 [shape = 's32[1]{0}', space=sflag, size = 0x4, scoped, tag = 'scoped memory for tpu_custom_call.1']
    #allocation12 [shape = 'u8[8192]{0}', space=vmem, size = 0x2000, scoped, tag = 'output window, operand 0']
    %13 = vsyncpa [#allocation5], 0
    %14 = vsyncpa [#allocation3], 0
    %s15 = scalar_lea.sflag [#allocation3], 1
    %16 = vsyncpa %s15, 0
    %17 = vsyncpa [#allocation8], 0
    %s18 = scalar_lea.sflag [#allocation8], 1
    %19 = vsyncpa %s18, 0
    %20 = vsyncpa [#allocation11], 0
    %21 = vsyncpa [#allocation4], 0
    %s22 = scalar_lea.sflag [#allocation4], 1
    %23 = vsyncpa %s22, 0
    loop: start=0, step=1, limit=6
    $region2: #{tpu_custom_call.1} parent=1 // loop_pre_header
      _
    $region3: #{tpu_custom_call.1} parent=1 // loop_header
      %s25 = sphi 0, %s29
      %p26 = scmp.ge.s32.totalorder %s25, 6
      %s32 = sphi 0, %s51
      %s33 = sphi 0, %s47
      %s34 = sphi 0, %s43
      %s35 = sphi 0, %s32
      %s36 = sphi 0, %s33
      %s37 = sphi 0, %s34
      %s38 = sphi 0, %s35
      %s39 = sphi 0, %s36
      %s40 = sphi 0, %s37
      %s52 = sphi 0, %s52
      %s54 = sphi 0, %s52
      %s55 = sphi 0, %s54
      %s69 = sphi 0, %s55
      %s75 = sphi 0, %s77
      %s78 = sphi 0, %s75
      %s79 = sphi 0, %s78
      %s95 = sphi 0, %s79
      %s101 = sphi 0, %s103
      %s104 = sphi 0, %s101
      %s105 = sphi 0, %s104
      %s121 = sphi 0, %s105
      %s127 = sphi 0, %s129
      %s130 = sphi 0, %s127
      %s131 = sphi 0, %s130
      %s147 = sphi 0, %s131
      %s153 = sphi 0, %s155
      %s156 = sphi 0, %s153
      %s157 = sphi 0, %s156
      %s173 = sphi 0, %s157
      %s179 = sphi 0, %s181
      %s182 = sphi 0, %s179
      %s183 = sphi 0, %s182
      %s199 = sphi 0, %s183
      %s203 = sphi 0, %s203
      %s205 = sphi 0, %s203
      %s206 = sphi 0, %s205
      %s220 = sphi 0, %s206
      %s224 = sphi 0, %s224
      %s226 = sphi 0, %s224
      %s227 = sphi 0, %s226
      %s241 = sphi 0, %s227
      %s251 = sphi 0, %s253
      %s254 = sphi 0, %s251
      %s255 = sphi 0, %s254
      %s271 = sphi 0, %s255
    $region4: #{tpu_custom_call.1} parent=1 // loop_header_branch
      %28 = sbr.rel (%p26) target = $region8
    $region5: #{tpu_custom_call.1} parent=1 // loop_body
      %s30 = ssub.s32 %s25, 1
      %s31 = ssub.s32 %s25, 2
      %s41 = sadd.s32 1, %s34
      %p42 = scmp.ge.s32.totalorder %s41, 1
      %s43 = scalar_select %p42, 0, %s41
      %s44 = sadd.s32 1, %s33
      %s45 = scalar_select %p42, %s44, %s33
      %p46 = scmp.ge.s32.totalorder %s45, 2
      %s47 = scalar_select %p46, 0, %s45
      %s48 = sadd.s32 1, %s32
      %s49 = scalar_select %p46, %s48, %s32
      %p50 = scmp.ge.s32.totalorder %s49, 2
      %s51 = scalar_select %p50, 0, %s49
      %s53 = sadd.s32 %s52, 1
      %p56 = scmp.eq.s32.totalorder %s25, 3
      %p57 = scmp.ne.s32.totalorder %s52, %s54
      %p58 = scmp.eq.s32.totalorder %s25, 0
      %p59 = por %p57, %p58
      %p60 = scmp.ne.s32.totalorder %s52, %s54
      %p61 = scmp.eq.s32.totalorder %s30, 3
      %p62 = por %p60, %p61
      %p63 = scmp.ne.s32.totalorder %s54, %s55
      %p64 = scmp.eq.s32.totalorder %s30, 0
      %p65 = por %p63, %p64
      %p66 = scmp.ne.s32.totalorder %s54, %s55
      %p67 = scmp.eq.s32.totalorder %s31, 3
      %p68 = por %p66, %p67
      %p70 = scmp.ne.s32.totalorder %s55, %s69
      %p71 = scmp.eq.s32.totalorder %s31, 0
      %p72 = por %p70, %p71
      %s73 = ssub.s32 %s32, %s51
      %p74 = scmp.eq.s32.totalorder %s73, 0
      %s76 = sadd.s32 %s75, 1
      %s77 = scalar_select %p74, %s75, %s76
      %p80 = pneg %p74
      %p81 = scmp.eq.s32.totalorder %s25, 3
      %p82 = por %p80, %p81
      %p83 = scmp.ne.s32.totalorder %s75, %s78
      %p84 = scmp.eq.s32.totalorder %s25, 0
      %p85 = por %p83, %p84
      %p86 = scmp.ne.s32.totalorder %s75, %s78
      %p87 = scmp.eq.s32.totalorder %s30, 3
      %p88 = por %p86, %p87
      %p89 = scmp.ne.s32.totalorder %s78, %s79
      %p90 = scmp.eq.s32.totalorder %s30, 0
      %p91 = por %p89, %p90
      %p92 = scmp.ne.s32.totalorder %s78, %s79
      %p93 = scmp.eq.s32.totalorder %s31, 3
      %p94 = por %p92, %p93
      %p96 = scmp.ne.s32.totalorder %s79, %s95
      %p97 = scmp.eq.s32.totalorder %s31, 0
      %p98 = por %p96, %p97
      %s99 = ssub.s32 %s33, %s47
      %p100 = scmp.eq.s32.totalorder %s99, 0
      %s102 = sadd.s32 %s101, 1
      %s103 = scalar_select %p100, %s101, %s102
      %p106 = pneg %p100
      %p107 = scmp.eq.s32.totalorder %s25, 3
      %p108 = por %p106, %p107
      %p109 = scmp.ne.s32.totalorder %s101, %s104
      %p110 = scmp.eq.s32.totalorder %s25, 0
      %p111 = por %p109, %p110
      %p112 = scmp.ne.s32.totalorder %s101, %s104
      %p113 = scmp.eq.s32.totalorder %s30, 3
      %p114 = por %p112, %p113
      %p115 = scmp.ne.s32.totalorder %s104, %s105
      %p116 = scmp.eq.s32.totalorder %s30, 0
      %p117 = por %p115, %p116
      %p118 = scmp.ne.s32.totalorder %s104, %s105
      %p119 = scmp.eq.s32.totalorder %s31, 3
      %p120 = por %p118, %p119
      %p122 = scmp.ne.s32.totalorder %s105, %s121
      %p123 = scmp.eq.s32.totalorder %s31, 0
      %p124 = por %p122, %p123
      %s125 = ssub.s32 %s33, %s47
      %p126 = scmp.eq.s32.totalorder %s125, 0
      %s128 = sadd.s32 %s127, 1
      %s129 = scalar_select %p126, %s127, %s128
      %p132 = pneg %p126
      %p133 = scmp.eq.s32.totalorder %s25, 3
      %p134 = por %p132, %p133
      %p135 = scmp.ne.s32.totalorder %s127, %s130
      %p136 = scmp.eq.s32.totalorder %s25, 0
      %p137 = por %p135, %p136
      %p138 = scmp.ne.s32.totalorder %s127, %s130
      %p139 = scmp.eq.s32.totalorder %s30, 3
      %p140 = por %p138, %p139
      %p141 = scmp.ne.s32.totalorder %s130, %s131
      %p142 = scmp.eq.s32.totalorder %s30, 0
      %p143 = por %p141, %p142
      %p144 = scmp.ne.s32.totalorder %s130, %s131
      %p145 = scmp.eq.s32.totalorder %s31, 3
      %p146 = por %p144, %p145
      %p148 = scmp.ne.s32.totalorder %s131, %s147
      %p149 = scmp.eq.s32.totalorder %s31, 0
      %p150 = por %p148, %p149
      %s151 = ssub.s32 %s34, %s43
      %p152 = scmp.eq.s32.totalorder %s151, 0
      %s154 = sadd.s32 %s153, 1
      %s155 = scalar_select %p152, %s153, %s154
      %p158 = pneg %p152
      %p159 = scmp.eq.s32.totalorder %s25, 3
      %p160 = por %p158, %p159
      %p161 = scmp.ne.s32.totalorder %s153, %s156
      %p162 = scmp.eq.s32.totalorder %s25, 0
      %p163 = por %p161, %p162
      %p164 = scmp.ne.s32.totalorder %s153, %s156
      %p165 = scmp.eq.s32.totalorder %s30, 3
      %p166 = por %p164, %p165
      %p167 = scmp.ne.s32.totalorder %s156, %s157
      %p168 = scmp.eq.s32.totalorder %s30, 0
      %p169 = por %p167, %p168
      %p170 = scmp.ne.s32.totalorder %s156, %s157
      %p171 = scmp.eq.s32.totalorder %s31, 3
      %p172 = por %p170, %p171
      %p174 = scmp.ne.s32.totalorder %s157, %s173
      %p175 = scmp.eq.s32.totalorder %s31, 0
      %p176 = por %p174, %p175
      %s177 = ssub.s32 %s34, %s43
      %p178 = scmp.eq.s32.totalorder %s177, 0
      %s180 = sadd.s32 %s179, 1
      %s181 = scalar_select %p178, %s179, %s180
      %p184 = pneg %p178
      %p185 = scmp.eq.s32.totalorder %s25, 3
      %p186 = por %p184, %p185
      %p187 = scmp.ne.s32.totalorder %s179, %s182
      %p188 = scmp.eq.s32.totalorder %s25, 0
      %p189 = por %p187, %p188
      %p190 = scmp.ne.s32.totalorder %s179, %s182
      %p191 = scmp.eq.s32.totalorder %s30, 3
      %p192 = por %p190, %p191
      %p193 = scmp.ne.s32.totalorder %s182, %s183
      %p194 = scmp.eq.s32.totalorder %s30, 0
      %p195 = por %p193, %p194
      %p196 = scmp.ne.s32.totalorder %s182, %s183
      %p197 = scmp.eq.s32.totalorder %s31, 3
      %p198 = por %p196, %p197
      %p200 = scmp.ne.s32.totalorder %s183, %s199
      %p201 = scmp.eq.s32.totalorder %s31, 0
      %p202 = por %p200, %p201
      %s204 = sadd.s32 %s203, 1
      %p207 = scmp.eq.s32.totalorder %s25, 3
      %p208 = scmp.ne.s32.totalorder %s203, %s205
      %p209 = scmp.eq.s32.totalorder %s25, 0
      %p210 = por %p208, %p209
      %p211 = scmp.ne.s32.totalorder %s203, %s205
      %p212 = scmp.eq.s32.totalorder %s30, 3
      %p213 = por %p211, %p212
      %p214 = scmp.ne.s32.totalorder %s205, %s206
      %p215 = scmp.eq.s32.totalorder %s30, 0
      %p216 = por %p214, %p215
      %p217 = scmp.ne.s32.totalorder %s205, %s206
      %p218 = scmp.eq.s32.totalorder %s31, 3
      %p219 = por %p217, %p218
      %p221 = scmp.ne.s32.totalorder %s206, %s220
      %p222 = scmp.eq.s32.totalorder %s31, 0
      %p223 = por %p221, %p222
      %s225 = sadd.s32 %s224, 1
      %p228 = scmp.eq.s32.totalorder %s25, 3
      %p229 = scmp.ne.s32.totalorder %s224, %s226
      %p230 = scmp.eq.s32.totalorder %s25, 0
      %p231 = por %p229, %p230
      %p232 = scmp.ne.s32.totalorder %s224, %s226
      %p233 = scmp.eq.s32.totalorder %s30, 3
      %p234 = por %p232, %p233
      %p235 = scmp.ne.s32.totalorder %s226, %s227
      %p236 = scmp.eq.s32.totalorder %s30, 0
      %p237 = por %p235, %p236
      %p238 = scmp.ne.s32.totalorder %s226, %s227
      %p239 = scmp.eq.s32.totalorder %s31, 3
      %p240 = por %p238, %p239
      %p242 = scmp.ne.s32.totalorder %s227, %s241
      %p243 = scmp.eq.s32.totalorder %s31, 0
      %p244 = por %p242, %p243
      %s245 = ssub.s32 %s32, %s51
      %s246 = ssub.s32 %s34, %s43
      %s247 = sor.u32 %s245, %s246
      %s248 = ssub.s32 %s33, %s47
      %s249 = sor.u32 %s247, %s248
      %p250 = scmp.eq.s32.totalorder %s249, 0
      %s252 = sadd.s32 %s251, 1
      %s253 = scalar_select %p250, %s251, %s252
      %p256 = pneg %p250
      %p257 = scmp.eq.s32.totalorder %s25, 3
      %p258 = por %p256, %p257
      %p259 = scmp.ne.s32.totalorder %s251, %s254
      %p260 = scmp.eq.s32.totalorder %s25, 0
      %p261 = por %p259, %p260
      %p262 = scmp.ne.s32.totalorder %s251, %s254
      %p263 = scmp.eq.s32.totalorder %s30, 3
      %p264 = por %p262, %p263
      %p265 = scmp.ne.s32.totalorder %s254, %s255
      %p266 = scmp.eq.s32.totalorder %s30, 0
      %p267 = por %p265, %p266
      %p268 = scmp.ne.s32.totalorder %s254, %s255
      %p269 = scmp.eq.s32.totalorder %s31, 3
      %p270 = por %p268, %p269
      %p272 = scmp.ne.s32.totalorder %s255, %s271
      %p273 = scmp.eq.s32.totalorder %s31, 0
      %p274 = por %p272, %p273
      %p275 = scmp.le.s32.totalorder 1, %s25
      %p276 = scmp.lt.s32.totalorder %s25, 5
      %p277 = pnand %p275, %p276
      %p278 = pneg %p277
      // Predicated region
      $region9: #{tpu_custom_call.1} parent=5 // pred_check
        _
      $region10: #{tpu_custom_call.1} parent=5 // pred_check_branch
        %280 = sbr.rel (%p277) target = $region12
      $region11: #{tpu_custom_call.1} parent=5 // pred_region
        %s281 = ssub.s32 %s25, 1
        // Predicated region
        $region13: #{tpu_custom_call.1} parent=11 // pred_check
          %p282 = pneg %p65
        $region14: #{tpu_custom_call.1} parent=11 // pred_check_branch
          %284 = sbr.rel (%p282) target = $region16
        $region15: #{tpu_custom_call.1} parent=11 // pred_region
          %s286 = ssub.s32 32, 32
          %287 = vsyncadd [#allocation5], %s286
          %290 = dma.hbm_to_smem %s0, 32, [#allocation2], [#allocation5]
        $region16: #{tpu_custom_call.1} parent=11 // pred_fallthru
          _
        // Predicated region
        $region17: #{tpu_custom_call.1} parent=11 // pred_check
          %p291 = pneg %p169
        $region18: #{tpu_custom_call.1} parent=11 // pred_check_branch
          %293 = sbr.rel (%p291) target = $region20
        $region19: #{tpu_custom_call.1} parent=11 // pred_region
          %p294 = scmp.lt.s32.totalorder %s37, 0
          %s295 = scalar_select %p294, %s37, 0
          %s296 = smul.addr %s295, 8
          %s297 = scalar_lea.vmem %s4, %s296
        $region20: #{tpu_custom_call.1} parent=11 // pred_fallthru
          _
        // Predicated region
        $region21: #{tpu_custom_call.1} parent=11 // pred_check
          %p298 = pneg %p195
        $region22: #{tpu_custom_call.1} parent=11 // pred_check_branch
          %300 = sbr.rel (%p298) target = $region24
        $region23: #{tpu_custom_call.1} parent=11 // pred_region
          %p301 = scmp.lt.s32.totalorder %s37, 0
          %s302 = scalar_select %p301, %s37, 0
          %s303 = smul.addr %s302, 8
          %s304 = scalar_lea.vmem %s5, %s303
        $region24: #{tpu_custom_call.1} parent=11 // pred_fallthru
          _
        // Predicated region
        $region25: #{tpu_custom_call.1} parent=11 // pred_check
          %p305 = pneg %p216
        $region26: #{tpu_custom_call.1} parent=11 // pred_check_branch
          %307 = sbr.rel (%p305) target = $region28
        $region27: #{tpu_custom_call.1} parent=11 // pred_region
          %s309 = ssub.s32 128, 128
          %310 = vsyncadd [#allocation11], %s309
          %s312 = sshll.u32 [#allocation10], 4
          %s313 = int_to_ptr.vmem [resolvable:$true] %s312
          %315 = dma.hbm_to_vmem [thread:$0]  %s6, 128, %s313, [#allocation11]
        $region28: #{tpu_custom_call.1} parent=11 // pred_fallthru
          _
        // Predicated region
        $region29: #{tpu_custom_call.1} parent=11 // pred_check
          %p316 = pneg %p237
        $region30: #{tpu_custom_call.1} parent=11 // pred_check_branch
          %318 = sbr.rel (%p316) target = $region32
        $region31: #{tpu_custom_call.1} parent=11 // pred_region
          _
        $region32: #{tpu_custom_call.1} parent=11 // pred_fallthru
          _
      $region12: #{tpu_custom_call.1} parent=5 // pred_fallthru
        _
      %p319 = scmp.lt.s32.totalorder %s25, 4
      // Predicated region
      $region33: #{tpu_custom_call.1} parent=5 // pred_check
        %p320 = pneg %p319
      $region34: #{tpu_custom_call.1} parent=5 // pred_check_branch
        %322 = sbr.rel (%p320) target = $region36
      $region35: #{tpu_custom_call.1} parent=5 // pred_region
        // Predicated region
        $region37: #{tpu_custom_call.1} parent=35 // pred_check
          %p323 = pneg %p85
        $region38: #{tpu_custom_call.1} parent=35 // pred_check_branch
          %325 = sbr.rel (%p323) target = $region40
        $region39: #{tpu_custom_call.1} parent=35 // pred_region
          %s326 = sand.u32 %s75, 1
          %s327 = scalar_lea.sflag [#allocation3], %s326
          %s328 = sand.u32 %s75, 1
          %s329 = smul.addr %s328, 4
          %s330 = scalar_lea.vmem [#allocation6], %s329
          %s332 = ssub.s32 64, 64
          %333 = vsyncadd %s327, %s332
          %s334 = smul.addr %s32, 64
          %s335 = scalar_lea.hbm %s1, %s334
          %s337 = sshll.u32 %s330, 4
          %s338 = int_to_ptr.vmem [resolvable:$true] %s337
          %340 = dma.hbm_to_vmem [thread:$0]  %s335, 64, %s338, %s327
        $region40: #{tpu_custom_call.1} parent=35 // pred_fallthru
          _
        // Predicated region
        $region41: #{tpu_custom_call.1} parent=35 // pred_check
          %p341 = pneg %p111
        $region42: #{tpu_custom_call.1} parent=35 // pred_check_branch
          %343 = sbr.rel (%p341) target = $region44
        $region43: #{tpu_custom_call.1} parent=35 // pred_region
          %s344 = sand.u32 %s25, 1
          %s345 = scalar_lea.sflag [#allocation8], %s344
          %s346 = sand.u32 %s101, 1
          %s347 = smul.addr %s346, 32
          %s348 = scalar_lea.vmem [#allocation7], %s347
          %s350 = ssub.s32 512, 512
          %351 = vsyncadd %s345, %s350
          %s352 = smul.addr %s33, 8
          %s353 = smul.addr %s352, 64
          %s354 = scalar_lea.hbm %s2, %s353
          %s355 = sshll.u32 %s348, 4
          %s356 = int_to_ptr.vmem [resolvable:$true] %s355
          %361 = dma.hbm_to_vmem [thread:$0]  %s354, 512, %s356, %s345, 64, 64, 4
        $region44: #{tpu_custom_call.1} parent=35 // pred_fallthru
          _
        // Predicated region
        $region45: #{tpu_custom_call.1} parent=35 // pred_check
          %p362 = pneg %p137
        $region46: #{tpu_custom_call.1} parent=35 // pred_check_branch
          %364 = sbr.rel (%p362) target = $region48
        $region47: #{tpu_custom_call.1} parent=35 // pred_region
          %s365 = sand.u32 %s25, 1
          %s366 = scalar_lea.sflag [#allocation8], %s365
          %s367 = sand.u32 %s127, 1
          %s368 = smul.addr %s367, 64
          %s369 = scalar_lea.vmem [#allocation9], %s368
          %s371 = ssub.s32 1024, 1024
          %372 = vsyncadd %s366, %s371
          %s373 = smul.addr %s33, 16
          %s374 = smul.addr %s373, 64
          %s375 = scalar_lea.hbm %s3, %s374
          %s376 = sshll.u32 %s369, 4
          %s377 = int_to_ptr.vmem [resolvable:$true] %s376
          %382 = dma.hbm_to_vmem [thread:$0]  %s375, 1024, %s377, %s366, 128, 128, 8
        $region48: #{tpu_custom_call.1} parent=35 // pred_fallthru
          _
      $region36: #{tpu_custom_call.1} parent=5 // pred_fallthru
        _
      %p383 = scmp.le.s32.totalorder 1, %s25
      %p384 = scmp.lt.s32.totalorder %s25, 5
      %p385 = pnand %p383, %p384
      %p386 = pneg %p385
      // Predicated region
      $region49: #{tpu_custom_call.1} parent=5 // pred_check
        _
      $region50: #{tpu_custom_call.1} parent=5 // pred_check_branch
        %388 = sbr.rel (%p385) target = $region52
      $region51: #{tpu_custom_call.1} parent=5 // pred_region
        %s389 = ssub.s32 %s25, 1
        // Predicated region
        $region53: #{tpu_custom_call.1} parent=51 // pred_check
          %p390 = pneg %p65
        $region54: #{tpu_custom_call.1} parent=51 // pred_check_branch
          %392 = sbr.rel (%p390) target = $region56
        $region55: #{tpu_custom_call.1} parent=51 // pred_region
          %393 = dma.done [#allocation5], 32
        $region56: #{tpu_custom_call.1} parent=51 // pred_fallthru
          _
        %s394 = sand.u32 %s78, 1
        %s395 = scalar_lea.sflag [#allocation3], %s394
        %s396 = sand.u32 %s78, 1
        %s397 = smul.addr %s396, 4
        %s398 = scalar_lea.vmem [#allocation6], %s397
        // Predicated region
        $region57: #{tpu_custom_call.1} parent=51 // pred_check
          %p399 = pneg %p91
        $region58: #{tpu_custom_call.1} parent=51 // pred_check_branch
          %401 = sbr.rel (%p399) target = $region60
        $region59: #{tpu_custom_call.1} parent=51 // pred_region
          %402 = dma.done %s395, 64
        $region60: #{tpu_custom_call.1} parent=51 // pred_fallthru
          _
        %s403 = sand.u32 %s30, 1
        %s404 = scalar_lea.sflag [#allocation8], %s403
        %s405 = sand.u32 %s104, 1
        %s406 = smul.addr %s405, 32
        %s407 = scalar_lea.vmem [#allocation7], %s406
        // Predicated region
        $region61: #{tpu_custom_call.1} parent=51 // pred_check
          %p408 = pneg %p117
        $region62: #{tpu_custom_call.1} parent=51 // pred_check_branch
          %410 = sbr.rel (%p408) target = $region64
        $region63: #{tpu_custom_call.1} parent=51 // pred_region
          %411 = dma.done %s404, 512
        $region64: #{tpu_custom_call.1} parent=51 // pred_fallthru
          _
        %s412 = sand.u32 %s30, 1
        %s413 = scalar_lea.sflag [#allocation8], %s412
        %s414 = sand.u32 %s130, 1
        %s415 = smul.addr %s414, 64
        %s416 = scalar_lea.vmem [#allocation9], %s415
        // Predicated region
        $region65: #{tpu_custom_call.1} parent=51 // pred_check
          %p417 = pneg %p143
        $region66: #{tpu_custom_call.1} parent=51 // pred_check_branch
          %419 = sbr.rel (%p417) target = $region68
        $region67: #{tpu_custom_call.1} parent=51 // pred_region
          %420 = dma.done %s413, 1024
        $region68: #{tpu_custom_call.1} parent=51 // pred_fallthru
          _
        // Predicated region
        $region69: #{tpu_custom_call.1} parent=51 // pred_check
          %p421 = pneg %p216
        $region70: #{tpu_custom_call.1} parent=51 // pred_check_branch
          %423 = sbr.rel (%p421) target = $region72
        $region71: #{tpu_custom_call.1} parent=51 // pred_region
          %424 = dma.done [#allocation11], 128
        $region72: #{tpu_custom_call.1} parent=51 // pred_fallthru
          _
        %425 = sfence
        %p426 = pneg %p65
        %p427 = pneg %p62
        %s428 = sand.u32 %s78, 1
        %s429 = scalar_lea.sflag [#allocation3], %s428
        %s430 = sand.u32 %s78, 1
        %s431 = smul.addr %s430, 4
        %s432 = scalar_lea.vmem [#allocation6], %s431
        %p433 = pneg %p91
        %p434 = pneg %p88
        %s435 = sand.u32 %s30, 1
        %s436 = scalar_lea.sflag [#allocation8], %s435
        %s437 = sand.u32 %s104, 1
        %s438 = smul.addr %s437, 32
        %s439 = scalar_lea.vmem [#allocation7], %s438
        %p440 = pneg %p117
        %p441 = pneg %p114
        %s442 = sand.u32 %s30, 1
        %s443 = scalar_lea.sflag [#allocation8], %s442
        %s444 = sand.u32 %s130, 1
        %s445 = smul.addr %s444, 64
        %s446 = scalar_lea.vmem [#allocation9], %s445
        %p447 = pneg %p143
        %p448 = pneg %p140
        %p449 = scmp.lt.s32.totalorder %s37, 0
        %s450 = scalar_select %p449, %s37, 0
        %s451 = smul.addr %s450, 8
        %s452 = scalar_lea.vmem %s4, %s451
        %p453 = pneg %p169
        %p454 = pneg %p166
        %p455 = scmp.lt.s32.totalorder %s37, 0
        %s456 = scalar_select %p455, %s37, 0
        %s457 = smul.addr %s456, 8
        %s458 = scalar_lea.vmem %s5, %s457
        %p459 = pneg %p195
        %p460 = pneg %p192
        %p461 = pneg %p216
        %p462 = pneg %p213
        %p463 = pneg %p237
        %p464 = pneg %p234
        %p465 = pneg %p267
        %p466 = pneg %p264
        %s467 = sand.u32 %s254, 1
        %s468 = scalar_lea.sflag [#allocation4], %s467
        %s469 = sand.u32 %s254, 1
        %s470 = smul.addr %s469, 8
        %s471 = scalar_lea.vmem [#allocation12], %s470
        %p472 = scmp.lt.s32.totalorder %s37, 0
        %s473 = scalar_select %p472, %s37, 0
        %s474 = smul.addr %s473, 8
        %s475 = scalar_lea.vmem %s4, %s474
        %p476 = scmp.lt.s32.totalorder %s37, 0
        %s477 = scalar_select %p476, %s37, 0
        %s478 = smul.addr %s477, 8
        %s479 = scalar_lea.vmem %s5, %s478
        %v481 = vld [vmem:[%s398] sm:$0xf]
        %v482 = vld [vmem:[%s416] sm:$0xff]
        %v483 = vld [vmem:[%s416 + $0x8] sm:$0xff]
        %v484 = vld [vmem:[%s416 + $0x10] sm:$0xff]
        %v485 = vld [vmem:[%s416 + $0x18] sm:$0xff]
        %v486 = vld [vmem:[%s416 + $0x20] sm:$0xff]
        %v487 = vld [vmem:[%s416 + $0x28] sm:$0xff]
        %v488 = vld [vmem:[%s416 + $0x30] sm:$0xff]
        %v489 = vld [vmem:[%s416 + $0x38] sm:$0xff]
        %v498 = vunpack.c.l.b16 %v482
        %v499 = vunpack.c.h.b16 %v482
        %v500 = vunpack.c.l.b16 %v483
        %v501 = vunpack.c.h.b16 %v483
        %v502 = vunpack.c.l.b16 %v484
        %v503 = vunpack.c.h.b16 %v484
        %v504 = vunpack.c.l.b16 %v485
        %v505 = vunpack.c.h.b16 %v485
        %v506 = vunpack.c.l.b16 %v486
        %v507 = vunpack.c.h.b16 %v486
        %v508 = vunpack.c.l.b16 %v487
        %v509 = vunpack.c.h.b16 %v487
        %v510 = vunpack.c.l.b16 %v488
        %v511 = vunpack.c.h.b16 %v488
        %v512 = vunpack.c.l.b16 %v489
        %v513 = vunpack.c.h.b16 %v489
        %v514 = vpack.c.b16 %v500, %v498
        %v515 = vpack.c.b16 %v501, %v499
        %v516 = vpack.c.b16 %v504, %v502
        %v517 = vpack.c.b16 %v505, %v503
        %v518 = vpack.c.b16 %v508, %v506
        %v519 = vpack.c.b16 %v509, %v507
        %v520 = vpack.c.b16 %v512, %v510
        %v521 = vpack.c.b16 %v513, %v511
        %vm530 = vcmask 523264
        %v532 = vsel %vm530, %v481, 0
        %534 = vmatprep.subr.bf16.mxu0 %v515
        %535 = vmatpush1.bf16.msra.mxu0 %v514
        %536 = vmatprep.subr.bf16.mxu0 %v517
        %537 = vmatpush1.bf16.msra.mxu0 %v516
        %538 = vmatprep.subr.bf16.mxu0 %v519
        %539 = vmatpush1.bf16.msra.mxu0 %v518
        %540 = vmatprep.subr.bf16.mxu0 %v521
        %541 = vmatpush1.bf16.msra.mxu0 %v520
        %542 = vmatprep.subr.bf16.mxu0 0
        %543 = vmatpush1.bf16.msra.mxu0 0
        %544 = vmatprep.subr.bf16.mxu0 0
        %545 = vmatpush1.bf16.msra.mxu0 0
        %546 = vmatprep.subr.bf16.mxu0 0
        %547 = vmatpush1.bf16.msra.mxu0 0
        %548 = vmatprep.subr.bf16.mxu0 0
        %549 = vmatpush1.bf16.msra.mxu0 0
        %550 = vmatprep.subr.bf16.mxu0 0
        %551 = vmatpush1.bf16.msra.mxu0 0
        %552 = vmatprep.subr.bf16.mxu0 0
        %553 = vmatpush1.bf16.msra.mxu0 0
        %554 = vmatprep.subr.bf16.mxu0 0
        %555 = vmatpush1.bf16.msra.mxu0 0
        %556 = vmatprep.subr.bf16.mxu0 0
        %557 = vmatpush1.bf16.msra.mxu0 0
        %558 = vmatprep.subr.bf16.mxu0 0
        %559 = vmatpush1.bf16.msra.mxu0 0
        %560 = vmatprep.subr.bf16.mxu0 0
        %561 = vmatpush1.bf16.msra.mxu0 0
        %562 = vmatprep.subr.bf16.mxu0 0
        %563 = vmatpush1.bf16.msra.mxu0 0
        %564 = vmatprep.subr.bf16.mxu0 0
        %565 = vmatpush1.bf16.msra.mxu0 0
        %566 = vmatprep.mubr.bf16.mxu0 0
        %567 = vmatmul.mubr.bf16.gmra.mrb[0].mxu0 %v532
        %v568 = vpop.f32.mrb[0].mxu0
        %v569 = vadd.f32 0.0, %v568
        %v570 = vpop.f32.mrb[0].mxu0
        %v571 = vadd.f32 0.0, %v570
        %v572 = vpop.f32.mrb[0].mxu0
        %v573 = vpop.f32.mrb[0].mxu0
        %574 = vdwg.mxu0
        %v575 = vpack.c.bf16 %v571, %v571
        %v576 = vld [vmem:[%s407] sm:$0xf]
        %v577 = vld [vmem:[%s407 + $0x4] sm:$0xf]
        %v578 = vld [vmem:[%s407 + $0x8] sm:$0xf]
        %v579 = vld [vmem:[%s407 + $0xc] sm:$0xf]
        %v580 = vld [vmem:[%s407 + $0x10] sm:$0xf]
        %v581 = vld [vmem:[%s407 + $0x14] sm:$0xf]
        %v582 = vld [vmem:[%s407 + $0x18] sm:$0xf]
        %v583 = vld [vmem:[%s407 + $0x1c] sm:$0xf]
        %v592 = vunpack.c.l.b16 %v576
        %v593 = vunpack.c.l.b16 %v577
        %v594 = vunpack.c.l.b16 %v578
        %v595 = vunpack.c.l.b16 %v579
        %v596 = vunpack.c.l.b16 %v580
        %v597 = vunpack.c.l.b16 %v581
        %v598 = vunpack.c.l.b16 %v582
        %v599 = vunpack.c.l.b16 %v583
        %v600 = vpack.c.b16 %v593, %v592
        %v601 = vpack.c.b16 %v595, %v594
        %v602 = vpack.c.b16 %v597, %v596
        %v603 = vpack.c.b16 %v599, %v598
        %608 = vmatprep.subr.bf16.mxu0 0
        %609 = vmatpush1.bf16.msra.mxu0 %v600
        %610 = vmatprep.subr.bf16.mxu0 0
        %611 = vmatpush1.bf16.msra.mxu0 %v601
        %612 = vmatprep.subr.bf16.mxu0 0
        %613 = vmatpush1.bf16.msra.mxu0 %v602
        %614 = vmatprep.subr.bf16.mxu0 0
        %615 = vmatpush1.bf16.msra.mxu0 %v603
        %616 = vmatprep.subr.bf16.mxu0 0
        %617 = vmatpush1.bf16.msra.mxu0 0
        %618 = vmatprep.subr.bf16.mxu0 0
        %619 = vmatpush1.bf16.msra.mxu0 0
        %620 = vmatprep.subr.bf16.mxu0 0
        %621 = vmatpush1.bf16.msra.mxu0 0
        %622 = vmatprep.subr.bf16.mxu0 0
        %623 = vmatpush1.bf16.msra.mxu0 0
        %624 = vmatprep.subr.bf16.mxu0 0
        %625 = vmatpush1.bf16.msra.mxu0 0
        %626 = vmatprep.subr.bf16.mxu0 0
        %627 = vmatpush1.bf16.msra.mxu0 0
        %628 = vmatprep.subr.bf16.mxu0 0
        %629 = vmatpush1.bf16.msra.mxu0 0
        %630 = vmatprep.subr.bf16.mxu0 0
        %631 = vmatpush1.bf16.msra.mxu0 0
        %632 = vmatprep.subr.bf16.mxu0 0
        %633 = vmatpush1.bf16.msra.mxu0 0
        %634 = vmatprep.subr.bf16.mxu0 0
        %635 = vmatpush1.bf16.msra.mxu0 0
        %636 = vmatprep.subr.bf16.mxu0 0
        %637 = vmatpush1.bf16.msra.mxu0 0
        %638 = vmatprep.subr.bf16.mxu0 0
        %639 = vmatpush1.bf16.msra.mxu0 0
        %640 = vmatprep.mubr.bf16.mxu0 0
        %641 = vmatmul.mubr.bf16.gmra.mrb[0].mxu0 %v532
        %v642 = vpop.f32.mrb[0].mxu0
        %v643 = vadd.f32 0.0, %v642
        %v644 = vpop.f32.mrb[0].mxu0
        %v645 = vpop.f32.mrb[0].mxu0
        %v646 = vpop.f32.mrb[0].mxu0
        %647 = vdwg.mxu0
        %v648 = vld [vmem:[%s475] sm:$0xff]
        %v649 = vmul.f32 %v643, %v648
        %651 = vrot.lane.b32.xlu0 %v643, 96
        %v652 = vpop.permute.xlu0 %651
        %654 = vrot.lane.b32.xlu0 %v643, 32
        %v655 = vpop.permute.xlu0 %654
        %vm657 = vcmask 261120
        %v658 = vsel %vm657, %v652, %v655
        %v659 = vsel %vm530, %v658, %v652
        %vm660 = vcmask 785408
        %v661 = vsel %vm660, %v659, %v655
        %v662 = vld [vmem:[%s479] sm:$0xff]
        %v663 = vmul.f32 %v661, %v662
        %v664 = vadd.f32 %v649, %v663
        %v665 = vld [vmem:[#allocation10] sm:$0xff]
        %v666 = vmul.f32 %v569, %v665
        %668 = vrot.lane.b32.xlu0 %v569, 96
        %v669 = vpop.permute.xlu0 %668
        %671 = vrot.lane.b32.xlu0 %v569, 32
        %v672 = vpop.permute.xlu0 %671
        %v674 = vsel %vm657, %v669, %v672
        %v675 = vsel %vm530, %v674, %v669
        %v676 = vsel %vm660, %v675, %v672
        %v677 = vld [vmem:[%s7] sm:$0xff]
        %v678 = vmul.f32 %v676, %v677
        %v679 = vadd.f32 %v666, %v678
        %s680 = smul.u32 %s37, 8
        %v681 = vlaneseq
        %v682 = vshrl.u32 %v681, 7
        %v683 = vstv %s680
        %v684 = vadd.s32 %v683, %v682
        %v685 = vlaneseq
        %v686 = vand.u32 %v685, 127
        %vm687 = vcmp.le.s32.totalorder %v686, %v684
        %v688 = vpack.c.bf16 %v664, %v664
        %v689 = vpack.c.bf16 %v679, %v679
        %v691 = vsel %vm530, %v688, 0
        %v694 = vsel %vm530, %v689, 0
        %696 = vmatprep.subr.bf16.mxu0 0
        %697 = vmatpush1.bf16.xpose.msra.mxu0 %v694
        %698 = vmatprep.subr.bf16.mxu0 0
        %699 = vmatpush1.bf16.xpose.msra.mxu0 0
        %700 = vmatprep.subr.bf16.mxu0 0
        %701 = vmatpush1.bf16.xpose.msra.mxu0 0
        %702 = vmatprep.subr.bf16.mxu0 0
        %703 = vmatpush1.bf16.xpose.msra.mxu0 0
        %704 = vmatprep.subr.bf16.mxu0 0
        %705 = vmatpush1.bf16.xpose.msra.mxu0 0
        %706 = vmatprep.subr.bf16.mxu0 0
        %707 = vmatpush1.bf16.xpose.msra.mxu0 0
        %708 = vmatprep.subr.bf16.mxu0 0
        %709 = vmatpush1.bf16.xpose.msra.mxu0 0
        %710 = vmatprep.subr.bf16.mxu0 0
        %711 = vmatpush1.bf16.xpose.msra.mxu0 0
        %712 = vmatprep.subr.bf16.mxu0 0
        %713 = vmatpush1.bf16.xpose.msra.mxu0 0
        %714 = vmatprep.subr.bf16.mxu0 0
        %715 = vmatpush1.bf16.xpose.msra.mxu0 0
        %716 = vmatprep.subr.bf16.mxu0 0
        %717 = vmatpush1.bf16.xpose.msra.mxu0 0
        %718 = vmatprep.subr.bf16.mxu0 0
        %719 = vmatpush1.bf16.xpose.msra.mxu0 0
        %720 = vmatprep.subr.bf16.mxu0 0
        %721 = vmatpush1.bf16.xpose.msra.mxu0 0
        %722 = vmatprep.subr.bf16.mxu0 0
        %723 = vmatpush1.bf16.xpose.msra.mxu0 0
        %724 = vmatprep.subr.bf16.mxu0 0
        %725 = vmatpush1.bf16.xpose.msra.mxu0 0
        %726 = vmatprep.subr.bf16.mxu0 0
        %727 = vmatpush1.bf16.xpose.msra.mxu0 0
        %728 = vmatprep.mubr.bf16.mxu0 0
        %729 = vmatmul.mubr.bf16.gmra.mrb[0].mxu0 %v691
        %v730 = vpop.f32.mrb[0].mxu0
        %v731 = vadd.f32 0.0, %v730
        %v732 = vpop.f32.mrb[0].mxu0
        %v733 = vpop.f32.mrb[0].mxu0
        %v734 = vpop.f32.mrb[0].mxu0
        %735 = vdwg.mxu0
        %v736 = vsel %vm687, %v731, -inf
        %vm737 = vcmask 64512
        %v738 = vsel %vm737, %v736, -inf
        %739 = vmax.xlane.f32.xlu0 %v738
        %v740 = vpop.xlane.xlu0 %739
        %v741 = vsub.f32 %v736, %v740
        %v742 = vmul.f32 %v741, 1.442695
        %v743 = vpow.pop %v742
        %v744 = vsel %vm737, %v743, 0.0
        %745 = vadd.xlane.f32.xlu0 %v744
        %v746 = vpop.xlane.xlu0 %745
        %s747 = smul.u32 %s36, 128
        %s748 = sld [smem:[#allocation2 + %s747]]
        %v749 = vrcp.pop %v746
        %v750 = vstv %s748
        %v751 = vmul.f32 %v750, %v749
        %v752 = vmul.f32 %v743, %v751
        %v753 = vpack.c.bf16 %v752, %v752
        %755 = vrot.lane.b32.xlu0 %v688, 64
        %v756 = vpop.permute.xlu0 %755
        %758 = vrot.lane.b32.xlu0 %v689, 64
        %v759 = vpop.permute.xlu0 %758
        %v761 = vsel %vm530, %v756, 0
        %v764 = vsel %vm530, %v759, 0
        %766 = vmatprep.subr.bf16.mxu0 0
        %767 = vmatpush1.bf16.xpose.msra.mxu0 %v764
        %768 = vmatprep.subr.bf16.mxu0 0
        %769 = vmatpush1.bf16.xpose.msra.mxu0 0
        %770 = vmatprep.subr.bf16.mxu0 0
        %771 = vmatpush1.bf16.xpose.msra.mxu0 0
        %772 = vmatprep.subr.bf16.mxu0 0
        %773 = vmatpush1.bf16.xpose.msra.mxu0 0
        %774 = vmatprep.subr.bf16.mxu0 0
        %775 = vmatpush1.bf16.xpose.msra.mxu0 0
        %776 = vmatprep.subr.bf16.mxu0 0
        %777 = vmatpush1.bf16.xpose.msra.mxu0 0
        %778 = vmatprep.subr.bf16.mxu0 0
        %779 = vmatpush1.bf16.xpose.msra.mxu0 0
        %780 = vmatprep.subr.bf16.mxu0 0
        %781 = vmatpush1.bf16.xpose.msra.mxu0 0
        %782 = vmatprep.subr.bf16.mxu0 0
        %783 = vmatpush1.bf16.xpose.msra.mxu0 0
        %784 = vmatprep.subr.bf16.mxu0 0
        %785 = vmatpush1.bf16.xpose.msra.mxu0 0
        %786 = vmatprep.subr.bf16.mxu0 0
        %787 = vmatpush1.bf16.xpose.msra.mxu0 0
        %788 = vmatprep.subr.bf16.mxu0 0
        %789 = vmatpush1.bf16.xpose.msra.mxu0 0
        %790 = vmatprep.subr.bf16.mxu0 0
        %791 = vmatpush1.bf16.xpose.msra.mxu0 0
        %792 = vmatprep.subr.bf16.mxu0 0
        %793 = vmatpush1.bf16.xpose.msra.mxu0 0
        %794 = vmatprep.subr.bf16.mxu0 0
        %795 = vmatpush1.bf16.xpose.msra.mxu0 0
        %796 = vmatprep.subr.bf16.mxu0 0
        %797 = vmatpush1.bf16.xpose.msra.mxu0 0
        %798 = vmatprep.mubr.bf16.mxu0 0
        %799 = vmatmul.mubr.bf16.gmra.mrb[0].mxu0 %v761
        %v800 = vpop.f32.mrb[0].mxu0
        %v801 = vadd.f32 0.0, %v800
        %v802 = vpop.f32.mrb[0].mxu0
        %v803 = vpop.f32.mrb[0].mxu0
        %v804 = vpop.f32.mrb[0].mxu0
        %805 = vdwg.mxu0
        %v806 = vsel %vm687, %v801, -inf
        %v807 = vsel %vm737, %v806, -inf
        %808 = vmax.xlane.f32.xlu0 %v807
        %v809 = vpop.xlane.xlu0 %808
        %v810 = vsub.f32 %v806, %v809
        %v811 = vmul.f32 %v810, 1.442695
        %v812 = vpow.pop %v811
        %v813 = vsel %vm737, %v812, 0.0
        %814 = vadd.xlane.f32.xlu0 %v813
        %v815 = vpop.xlane.xlu0 %814
        %s816 = sadd.s32 %s747, 1
        %s817 = sld [smem:[#allocation2 + %s816]]
        %v818 = vrcp.pop %v815
        %v819 = vstv %s817
        %v820 = vmul.f32 %v819, %v818
        %v821 = vmul.f32 %v812, %v820
        %v822 = vpack.c.bf16 %v821, %v821
        %v824 = vsel %vm737, %v822, 0
        %vm826 = vcmask 1043456
        %v828 = vsel %vm826, %v575, 0
        %830 = vmatprep.subr.bf16.mxu0 0
        %831 = vmatpush1.bf16.msra.mxu0 %v828
        %832 = vmatprep.subr.bf16.mxu0 0
        %833 = vmatpush1.bf16.msra.mxu0 0
        %834 = vmatprep.subr.bf16.mxu0 0
        %835 = vmatpush1.bf16.msra.mxu0 0
        %836 = vmatprep.subr.bf16.mxu0 0
        %837 = vmatpush1.bf16.msra.mxu0 0
        %838 = vmatprep.subr.bf16.mxu0 0
        %839 = vmatpush1.bf16.msra.mxu0 0
        %840 = vmatprep.subr.bf16.mxu0 0
        %841 = vmatpush1.bf16.msra.mxu0 0
        %842 = vmatprep.subr.bf16.mxu0 0
        %843 = vmatpush1.bf16.msra.mxu0 0
        %844 = vmatprep.subr.bf16.mxu0 0
        %845 = vmatpush1.bf16.msra.mxu0 0
        %846 = vmatprep.subr.bf16.mxu0 0
        %847 = vmatpush1.bf16.msra.mxu0 0
        %848 = vmatprep.subr.bf16.mxu0 0
        %849 = vmatpush1.bf16.msra.mxu0 0
        %850 = vmatprep.subr.bf16.mxu0 0
        %851 = vmatpush1.bf16.msra.mxu0 0
        %852 = vmatprep.subr.bf16.mxu0 0
        %853 = vmatpush1.bf16.msra.mxu0 0
        %854 = vmatprep.subr.bf16.mxu0 0
        %855 = vmatpush1.bf16.msra.mxu0 0
        %856 = vmatprep.subr.bf16.mxu0 0
        %857 = vmatpush1.bf16.msra.mxu0 0
        %858 = vmatprep.subr.bf16.mxu0 0
        %859 = vmatpush1.bf16.msra.mxu0 0
        %860 = vmatprep.subr.bf16.mxu0 0
        %861 = vmatpush1.bf16.msra.mxu0 0
        %862 = vmatprep.mubr.bf16.mxu0 0
        %863 = vmatmul.mubr.bf16.gmra.mrb[0].mxu0 %v824
        %v864 = vpop.f32.mrb[0].mxu0
        %v865 = vadd.f32 0.0, %v864
        %v866 = vpop.f32.mrb[0].mxu0
        %v867 = vpop.f32.mrb[0].mxu0
        %v868 = vpop.f32.mrb[0].mxu0
        %869 = vdwg.mxu0
        %v871 = vsel %vm737, %v753, 0
        %873 = vmatprep.subr.bf16.mxu0 0
        %874 = vmatpush1.bf16.msra.mxu0 %v828
        %875 = vmatprep.subr.bf16.mxu0 0
        %876 = vmatpush1.bf16.msra.mxu0 0
        %877 = vmatprep.subr.bf16.mxu0 0
        %878 = vmatpush1.bf16.msra.mxu0 0
        %879 = vmatprep.subr.bf16.mxu0 0
        %880 = vmatpush1.bf16.msra.mxu0 0
        %881 = vmatprep.subr.bf16.mxu0 0
        %882 = vmatpush1.bf16.msra.mxu0 0
        %883 = vmatprep.subr.bf16.mxu0 0
        %884 = vmatpush1.bf16.msra.mxu0 0
        %885 = vmatprep.subr.bf16.mxu0 0
        %886 = vmatpush1.bf16.msra.mxu0 0
        %887 = vmatprep.subr.bf16.mxu0 0
        %888 = vmatpush1.bf16.msra.mxu0 0
        %889 = vmatprep.subr.bf16.mxu0 0
        %890 = vmatpush1.bf16.msra.mxu0 0
        %891 = vmatprep.subr.bf16.mxu0 0
        %892 = vmatpush1.bf16.msra.mxu0 0
        %893 = vmatprep.subr.bf16.mxu0 0
        %894 = vmatpush1.bf16.msra.mxu0 0
        %895 = vmatprep.subr.bf16.mxu0 0
        %896 = vmatpush1.bf16.msra.mxu0 0
        %897 = vmatprep.subr.bf16.mxu0 0
        %898 = vmatpush1.bf16.msra.mxu0 0
        %899 = vmatprep.subr.bf16.mxu0 0
        %900 = vmatpush1.bf16.msra.mxu0 0
        %901 = vmatprep.subr.bf16.mxu0 0
        %902 = vmatpush1.bf16.msra.mxu0 0
        %903 = vmatprep.subr.bf16.mxu0 0
        %904 = vmatpush1.bf16.msra.mxu0 0
        %905 = vmatprep.mubr.bf16.mxu0 0
        %906 = vmatmul.mubr.bf16.gmra.mrb[0].mxu0 %v871
        %v907 = vpop.f32.mrb[0].mxu0
        %v908 = vadd.f32 %v865, %v907
        %v909 = vpop.f32.mrb[0].mxu0
        %v910 = vpop.f32.mrb[0].mxu0
        %v911 = vpop.f32.mrb[0].mxu0
        %912 = vdwg.mxu0
        %913 = vst [vmem:[%s471] sm:$0xff] %v908
        %s914 = sand.u32 %s254, 1
        %s915 = scalar_lea.sflag [#allocation4], %s914
        %s916 = sand.u32 %s254, 1
        %s917 = smul.addr %s916, 8
        %s918 = scalar_lea.vmem [#allocation12], %s917
        // Predicated region
        $region73: #{tpu_custom_call.1} parent=51 // pred_check
          %p919 = pneg %p264
        $region74: #{tpu_custom_call.1} parent=51 // pred_check_branch
          %921 = sbr.rel (%p919) target = $region76
        $region75: #{tpu_custom_call.1} parent=51 // pred_region
          %s923 = ssub.s32 128, 128
          %924 = vsyncadd %s915, %s923
          %s925 = smul.addr %s37, 2
          %s926 = sadd.s32 %s36, %s925
          %s927 = smul.addr %s35, 2
          %s928 = sadd.s32 %s926, %s927
          %s929 = smul.addr %s928, 128
          %s930 = scalar_lea.hbm %s8, %s929
          %s932 = sshll.u32 %s918, 4
          %s933 = int_to_ptr.vmem [resolvable:$true] %s932
          %935 = dma.vmem_to_hbm [thread:$0]  %s933, 128, %s930, %s915
        $region76: #{tpu_custom_call.1} parent=51 // pred_fallthru
          _
      $region52: #{tpu_custom_call.1} parent=5 // pred_fallthru
        _
      %p936 = scmp.le.s32.totalorder 2, %s25
      // Predicated region
      $region77: #{tpu_custom_call.1} parent=5 // pred_check
        %p937 = pneg %p936
      $region78: #{tpu_custom_call.1} parent=5 // pred_check_branch
        %939 = sbr.rel (%p937) target = $region80
      $region79: #{tpu_custom_call.1} parent=5 // pred_region
        %s940 = ssub.s32 %s25, 2
        // Predicated region
        $region81: #{tpu_custom_call.1} parent=79 // pred_check
          %p941 = pneg %p270
        $region82: #{tpu_custom_call.1} parent=79 // pred_check_branch
          %943 = sbr.rel (%p941) target = $region84
        $region83: #{tpu_custom_call.1} parent=79 // pred_region
          %s944 = sand.u32 %s255, 1
          %s945 = scalar_lea.sflag [#allocation4], %s944
          %s946 = sand.u32 %s255, 1
          %s947 = smul.addr %s946, 8
          %s948 = scalar_lea.vmem [#allocation12], %s947
          %949 = dma.done %s945, 128
        $region84: #{tpu_custom_call.1} parent=79 // pred_fallthru
          _
      $region80: #{tpu_custom_call.1} parent=5 // pred_fallthru
        _
    $region6: #{tpu_custom_call.1} parent=1 // loop_footer
      %s29 = sadd.s32 1, %s25
    $region7: #{tpu_custom_call.1} parent=1 // loop_footer_branch
      %24 = sbr.rel target = $region3
    $region8: #{tpu_custom_call.1} parent=1 // loop_exit
      _
    %950 = vsyncpa [#allocation3], 1
    %s951 = scalar_lea.sflag [#allocation3], 1
    %952 = vsyncpa %s951, 1
    %953 = vsyncpa [#allocation8], 1
    %s954 = scalar_lea.sflag [#allocation8], 1
    %955 = vsyncpa %s954, 1
    %956 = vsyncpa [#allocation11], 1
    %957 = vsyncpa [#allocation4], 1
    %s958 = scalar_lea.sflag [#allocation4], 1
    %959 = vsyncpa %s958, 1
    %960 = vsyncpa [#allocation5], 1
    %s961 = scalar_lea.sflag [#allocation5], 1
    %962 = vsyncpa %s961, 1

</llo_original>
